<compile_context>
chip_gen: v7x
topology: tpu7x:2x2x1
jax: 0.10.0
libtpu: 0.0.40
codegen_flags: <defaults>
</compile_context>

<pallas_src>
import math
import jax
import jax.numpy as jnp
from jax.experimental import pallas as pl
from jax.experimental.pallas import tpu as pltpu


# ---------------- Fused kernel (support resident in VMEM scratch) ----------------

def _fused_gcn_kernel(x_ref, w_ref, b_ref, adj_ref, o_ref, support_ref):
    """Grid = (row tiles i, contraction tiles k).

    x_ref       : (tk, F_in_pad)        streamed X chunk (only consumed at i == 0)
    w_ref       : (F_in_pad, F_out_pad) resident (constant block index)
    b_ref       : (1, F_out_pad)        resident
    adj_ref     : (tm, tk)              streamed adjacency tile
    o_ref       : (tm, F_out_pad)       output row tile, resident across k
    support_ref : (N_pad, F_out_pad)    VMEM scratch holding X @ W
    """
    i = pl.program_id(0)
    k = pl.program_id(1)
    tk = adj_ref.shape[1]
    row0 = pl.multiple_of(k * tk, tk)

    # Build the k-th chunk of support = X @ W during the first row tile's k
    # sweep; it stays resident in the VMEM scratch for every later row tile.
    # (The row axis must therefore stay "arbitrary": the scratch would be
    # per-core under core-parallel sharding.)
    @pl.when(i == 0)
    def _():
        support_ref[pl.ds(row0, tk), :] = jnp.dot(
            x_ref[...], w_ref[...], preferred_element_type=jnp.float32
        )

    # Start each output row tile from the (broadcast) bias.
    @pl.when(k == 0)
    def _():
        o_ref[...] = jnp.broadcast_to(b_ref[...], o_ref.shape)

    # Accumulate adj_tile @ support_chunk; the output block index is (i, 0)
    # for every k, so the f32 output tile is the accumulator in VMEM.
    s_chunk = support_ref[pl.ds(row0, tk), :]
    o_ref[...] += jnp.dot(adj_ref[...], s_chunk, preferred_element_type=jnp.float32)


# ---------------- Two-stage fallback kernels (support streamed via HBM) ----------------

def _support_kernel(x_ref, w_ref, o_ref):
    """support = X @ W, K-tiled over F_in; f32 output block is the accumulator."""
    @pl.when(pl.program_id(1) == 0)
    def _():
        o_ref[...] = jnp.zeros_like(o_ref)
    o_ref[...] += jnp.dot(x_ref[...], w_ref[...], preferred_element_type=jnp.float32)


def _aggregate_kernel(b_ref, adj_ref, s_ref, o_ref):
    """out = adj @ support + bias, K-tiled over nodes; support streamed from HBM."""
    @pl.when(pl.program_id(1) == 0)
    def _():
        o_ref[...] = jnp.broadcast_to(b_ref[...], o_ref.shape)
    o_ref[...] += jnp.dot(adj_ref[...], s_ref[...], preferred_element_type=jnp.float32)


# ---------------- Helpers ----------------

def _round_up(x, m):
    return (x + m - 1) // m * m


def _pad2d(a, rows, cols):
    r, c = a.shape
    if r == rows and c == cols:
        return a
    return jnp.zeros((rows, cols), a.dtype).at[:r, :c].set(a)


def _vmem_limit_bytes():
    """Generation-aware scoped-VMEM request (~82% of physical capacity)."""
    cap = None
    try:
        cap = getattr(pltpu.get_tpu_info(), "vmem_capacity_bytes", None)
    except Exception:  # interpret mode / older runtimes
        cap = None
    if not cap:
        cap = 64 * 1024 * 1024  # conservative (v7x-sized) fallback
    return int(0.82 * int(cap))


def _fused_vmem_bytes(N_pad, F_in_pad, F_out_pad, tm, tk):
    # Pallas double-buffers every pipelined input/output block (even those
    # with a constant block index), so count the 2x explicitly.
    return 4 * (
        N_pad * F_out_pad             # support scratch (single copy)
        + 2 * tk * F_in_pad           # streamed X chunks
        + 2 * F_in_pad * F_out_pad    # W
        + 2 * F_out_pad               # bias
        + 2 * tm * tk                 # streamed adj tiles
        + 2 * tm * F_out_pad          # output row tiles
    )


# ---------------- Wrapper ----------------

def graph_conv(x, adj, weight, bias=None, *, force_two_stage=False):
    """GraphConv forward. x: [N, F_in], adj: [N, N] (dense), weight: [F_in, F_out]."""
    N, F_in = x.shape
    F_in_w, F_out = weight.shape
    assert F_in_w == F_in
    assert adj.shape == (N, N)

    x = x.astype(jnp.float32)
    adj = adj.astype(jnp.float32)
    weight = weight.astype(jnp.float32)

    # Pad everything to 128-aligned, lane-dense shapes (zeros do not change the
    # math; padded rows/cols are sliced off at the end).
    N_pad = _round_up(N, 128)
    F_in_pad = _round_up(F_in, 128)
    F_out_pad = _round_up(F_out, 128)

    x_p = _pad2d(x, N_pad, F_in_pad)
    w_p = _pad2d(weight, F_in_pad, F_out_pad)
    adj_p = _pad2d(adj, N_pad, N_pad)
    if bias is not None:
        b_p = _pad2d(bias.reshape(1, F_out).astype(jnp.float32), 1, F_out_pad)
    else:
        b_p = jnp.zeros((1, F_out_pad), jnp.float32)

    vmem_limit = _vmem_limit_bytes()
    budget = int(0.9 * vmem_limit)  # headroom for compiler-internal scratch

    # ---- fused path tile selection: biggest adj tile that fits the budget ----
    fused_tiles = None
    if not force_two_stage:
        for tm in (256, 128):
            if N_pad % tm:
                continue
            for tk in (1024, 512, 256, 128):
                if N_pad % tk:
                    continue
                if _fused_vmem_bytes(N_pad, F_in_pad, F_out_pad, tm, tk) <= budget:
                    fused_tiles = (tm, tk)
                    break
            if fused_tiles is not None:
                break

    if fused_tiles is not None:
        tm, tk = fused_tiles
        grid = (N_pad // tm, N_pad // tk)
        out_p = pl.pallas_call(
            _fused_gcn_kernel,
            out_shape=jax.ShapeDtypeStruct((N_pad, F_out_pad), jnp.float32),
            grid=grid,
            in_specs=[
                # X: advanced through its k chunks only while i == 0; for i > 0
                # the index pins at block 0 so consecutive equal block indices
                # let the pipeline skip the redundant HBM reads.
                pl.BlockSpec((tk, F_in_pad),
                             lambda i, k: (jnp.where(i == 0, k, 0), 0)),
                pl.BlockSpec((F_in_pad, F_out_pad), lambda i, k: (0, 0)),  # W
                pl.BlockSpec((1, F_out_pad), lambda i, k: (0, 0)),         # bias
                pl.BlockSpec((tm, tk), lambda i, k: (i, k)),               # adj
            ],
            out_specs=pl.BlockSpec((tm, F_out_pad), lambda i, k: (i, 0)),
            scratch_shapes=[pltpu.VMEM((N_pad, F_out_pad), jnp.float32)],
            compiler_params=pltpu.CompilerParams(
                # i carries the shared support scratch (filled at i == 0) and
                # k is a reduction into the resident output block -> both axes
                # must stay "arbitrary" on this fused path.
                dimension_semantics=("arbitrary", "arbitrary"),
                vmem_limit_bytes=vmem_limit,
            ),
        )(x_p, w_p, b_p, adj_p)
        return out_p[:N, :F_out]

    # ---- fallback: two-stage path, support streamed from HBM ----------------
    # Row axis is "parallel" so both v7x TensorCores shard it; the extra HBM
    # traffic vs. the fused path is ~F_out_pad/tm of the adj stream.
    tm_s = 256 if N_pad % 256 == 0 else 128
    tk_s = next(c for c in (512, 256, 128) if F_in_pad % c == 0)
    support = pl.pallas_call(
        _support_kernel,
        out_shape=jax.ShapeDtypeStruct((N_pad, F_out_pad), jnp.float32),
        grid=(N_pad // tm_s, F_in_pad // tk_s),
        in_specs=[
            pl.BlockSpec((tm_s, tk_s), lambda i, k: (i, k)),
            pl.BlockSpec((tk_s, F_out_pad), lambda i, k: (k, 0)),
        ],
        out_specs=pl.BlockSpec((tm_s, F_out_pad), lambda i, k: (i, 0)),
        compiler_params=pltpu.CompilerParams(
            dimension_semantics=("parallel", "arbitrary"),
            vmem_limit_bytes=vmem_limit,
        ),
    )(x_p, w_p)

    tm2 = 256 if N_pad % 256 == 0 else 128
    tk2 = 128
    for cand in (1024, 512, 256, 128):
        if N_pad % cand:
            continue
        stage2_bytes = 4 * (2 * F_out_pad + 2 * tm2 * cand
                            + 2 * cand * F_out_pad + 2 * tm2 * F_out_pad)
        if stage2_bytes <= budget:
            tk2 = cand
            break

    out_p = pl.pallas_call(
        _aggregate_kernel,
        out_shape=jax.ShapeDtypeStruct((N_pad, F_out_pad), jnp.float32),
        grid=(N_pad // tm2, N_pad // tk2),
        in_specs=[
            pl.BlockSpec((1, F_out_pad), lambda i, k: (0, 0)),      # bias
            pl.BlockSpec((tm2, tk2), lambda i, k: (i, k)),          # adj
            pl.BlockSpec((tk2, F_out_pad), lambda i, k: (k, 0)),    # support
        ],
        out_specs=pl.BlockSpec((tm2, F_out_pad), lambda i, k: (i, 0)),
        compiler_params=pltpu.CompilerParams(
            dimension_semantics=("parallel", "arbitrary"),
            vmem_limit_bytes=vmem_limit,
        ),
    )(b_p, adj_p, support)
    return out_p[:N, :F_out]


# ---------------- Parameter init (matches reset_parameters) ----------------

def init_graph_conv_params(key, input_dim, output_dim, use_bias=True):
    stdv = 1.0 / math.sqrt(output_dim)
    kw, kb = jax.random.split(key)
    weight = jax.random.uniform(
        kw, (input_dim, output_dim), jnp.float32, minval=-stdv, maxval=stdv
    )
    bias = (
        jax.random.uniform(kb, (output_dim,), jnp.float32, minval=-stdv, maxval=stdv)
        if use_bias
        else None
    )
    return weight, bias


if __name__ == "__main__":
    key = jax.random.PRNGKey(0)
    k_x, k_adj, k_param = jax.random.split(key, 3)

    N = 64          # number of graph nodes
    input_dim = 32
    output_dim = 16

    x = jax.random.normal(k_x, (N, input_dim), jnp.float32)

    # Deterministic sparse-ish adjacency (row-normalized), stored dense.
    adj_raw = (jax.random.uniform(k_adj, (N, N), jnp.float32) < 0.1).astype(jnp.float32)
    adj_raw = adj_raw + jnp.eye(N, dtype=jnp.float32)  # self loops
    adj = adj_raw / jnp.sum(adj_raw, axis=1, keepdims=True)

    weight, bias = init_graph_conv_params(k_param, input_dim, output_dim, use_bias=True)

    ref = adj @ (x @ weight) + bias
    ref_nb = adj @ (x @ weight)

    # Fused path, with bias.
    out = jax.block_until_ready(graph_conv(x, adj, weight, bias))
    assert out.shape == (N, output_dim)
    assert jnp.allclose(out, ref, atol=1e-5, rtol=1e-5)

    # Fused path, without bias.
    out_nb = jax.block_until_ready(graph_conv(x, adj, weight, None))
    assert jnp.allclose(out_nb, ref_nb, atol=1e-5, rtol=1e-5)

    # Two-stage fallback path (support streamed from HBM, row axis parallel).
    out_ts = jax.block_until_ready(
        graph_conv(x, adj, weight, bias, force_two_stage=True)
    )
    assert jnp.allclose(out_ts, ref, atol=1e-5, rtol=1e-5)

    print("KERNEL_OK")
</pallas_src>

<mosaic_0001>
module attributes {stable_mosaic.version = 11 : i64} {
  func.func @_fused_gcn_kernel(%arg0: i32, %arg1: i32, %arg2: memref<128x128xf32, #tpu.memory_space<vmem>>, %arg3: memref<128x128xf32, #tpu.memory_space<vmem>>, %arg4: memref<1x128xf32, #tpu.memory_space<vmem>>, %arg5: memref<128x128xf32, #tpu.memory_space<vmem>>, %arg6: memref<128x128xf32, #tpu.memory_space<vmem>>, %arg7: memref<128x128xf32, #tpu.memory_space<vmem>>) attributes {dimension_semantics = [#tpu.dimension_semantics<arbitrary>, #tpu.dimension_semantics<arbitrary>], iteration_bounds = array<i64: 1, 1>, scalar_prefetch = 0 : i64, scratch_operands = 1 : i64, tpu.core_type = #tpu.core_type<tc>, window_params = [{transform_indices = @transform_0, window_bounds = array<i64: 128, 128>}, {pipeline_mode = #tpu.pipeline_mode<synchronous>, transform_indices = @transform_1, window_bounds = array<i64: 128, 128>}, {pipeline_mode = #tpu.pipeline_mode<synchronous>, transform_indices = @transform_2, window_bounds = array<i64: 1, 128>}, {transform_indices = @transform_3, window_bounds = array<i64: 128, 128>}, {transform_indices = @transform_4, window_bounds = array<i64: 128, 128>}]} {
    %c128_i32 = arith.constant 128 : i32
    %0 = arith.muli %arg1, %c128_i32 : i32
    %1 = tpu.assume_multiple %0, 128 : i32
    %c0_i32 = arith.constant 0 : i32
    %2 = arith.cmpi eq, %arg0, %c0_i32 : i32
    %3 = arith.extui %2 : i1 to i32
    %c0_i32_0 = arith.constant 0 : i32
    %4 = arith.cmpi ne, %3, %c0_i32_0 : i32
    scf.if %4 {
      %c0_9 = arith.constant 0 : index
      %c0_10 = arith.constant 0 : index
      %15 = vector.load %arg2[%c0_9, %c0_10] : memref<128x128xf32, #tpu.memory_space<vmem>>, vector<128x128xf32>
      %c0_11 = arith.constant 0 : index
      %c0_12 = arith.constant 0 : index
      %16 = vector.load %arg3[%c0_11, %c0_12] : memref<128x128xf32, #tpu.memory_space<vmem>>, vector<128x128xf32>
      %cst_13 = arith.constant dense<0.000000e+00> : vector<128x128xf32>
      %17 = tpu.matmul %15, %16, %cst_13 {dimension_numbers = #tpu.dot_dimension_numbers<[1], [0], [0], [1], [0, 0, 1, 1], [], []>} : vector<128x128xf32>, vector<128x128xf32>, vector<128x128xf32> -> vector<128x128xf32>
      %18 = arith.index_cast %1 : i32 to index
      %c0_14 = arith.constant 0 : index
      %19 = vector.load %arg7[%18, %c0_14] : memref<128x128xf32, #tpu.memory_space<vmem>>, vector<128x128xf32>
      tpu.vector_store %arg7[%18, %c0_14], %17 {strides = array<i32>} : memref<128x128xf32, #tpu.memory_space<vmem>>, vector<128x128xf32>,
    } else {
    }
    %c0_i32_1 = arith.constant 0 : i32
    %5 = arith.cmpi eq, %arg1, %c0_i32_1 : i32
    %6 = arith.extui %5 : i1 to i32
    %c0_i32_2 = arith.constant 0 : i32
    %7 = arith.cmpi ne, %6, %c0_i32_2 : i32
    scf.if %7 {
      %c0_9 = arith.constant 0 : index
      %c0_10 = arith.constant 0 : index
      %15 = vector.load %arg4[%c0_9, %c0_10] : memref<1x128xf32, #tpu.memory_space<vmem>>, vector<1x128xf32>
      %16 = vector.shape_cast %15 : vector<1x128xf32> to vector<1x128xf32>
      %17 = vector.broadcast %16 : vector<1x128xf32> to vector<128x128xf32>
      %c0_11 = arith.constant 0 : index
      %c0_12 = arith.constant 0 : index
      %18 = vector.load %arg6[%c0_11, %c0_12] : memref<128x128xf32, #tpu.memory_space<vmem>>, vector<128x128xf32>
      tpu.vector_store %arg6[%c0_11, %c0_12], %17 {strides = array<i32>} : memref<128x128xf32, #tpu.memory_space<vmem>>, vector<128x128xf32>,
    } else {
    }
    %8 = arith.index_cast %1 : i32 to index
    %c0 = arith.constant 0 : index
    %9 = vector.load %arg7[%8, %c0] : memref<128x128xf32, #tpu.memory_space<vmem>>, vector<128x128xf32>
    %c0_3 = arith.constant 0 : index
    %c0_4 = arith.constant 0 : index
    %10 = vector.load %arg6[%c0_3, %c0_4] : memref<128x128xf32, #tpu.memory_space<vmem>>, vector<128x128xf32>
    %c0_5 = arith.constant 0 : index
    %c0_6 = arith.constant 0 : index
    %11 = vector.load %arg5[%c0_5, %c0_6] : memref<128x128xf32, #tpu.memory_space<vmem>>, vector<128x128xf32>
    %cst = arith.constant dense<0.000000e+00> : vector<128x128xf32>
    %12 = tpu.matmul %11, %9, %cst {dimension_numbers = #tpu.dot_dimension_numbers<[1], [0], [0], [1], [0, 0, 1, 1], [], []>} : vector<128x128xf32>, vector<128x128xf32>, vector<128x128xf32> -> vector<128x128xf32>
    %13 = arith.addf %10, %12 : vector<128x128xf32>
    %c0_7 = arith.constant 0 : index
    %c0_8 = arith.constant 0 : index
    %14 = vector.load %arg6[%c0_7, %c0_8] : memref<128x128xf32, #tpu.memory_space<vmem>>, vector<128x128xf32>
    tpu.vector_store %arg6[%c0_7, %c0_8], %13 {strides = array<i32>} : memref<128x128xf32, #tpu.memory_space<vmem>>, vector<128x128xf32>,
    return
  }
  func.func @transform_0(%arg0: i32, %arg1: i32) -> (i32, i32) {
    %c0_i32 = arith.constant 0 : i32
    %0 = arith.cmpi eq, %arg0, %c0_i32 : i32
    %c0_i32_0 = arith.constant 0 : i32
    %1 = arith.select %0, %arg1, %c0_i32_0 : i32
    %c0_i32_1 = arith.constant 0 : i32
    %c0_i32_2 = arith.constant 0 : i32
    return %1, %c0_i32_1 : i32, i32
  }
  func.func @transform_1(%arg0: i32, %arg1: i32) -> (i32, i32) {
    %c0_i32 = arith.constant 0 : i32
    %c0_i32_0 = arith.constant 0 : i32
    %c0_i32_1 = arith.constant 0 : i32
    return %c0_i32, %c0_i32_0 : i32, i32
  }
  func.func @transform_2(%arg0: i32, %arg1: i32) -> (i32, i32) {
    %c0_i32 = arith.constant 0 : i32
    %c0_i32_0 = arith.constant 0 : i32
    %c0_i32_1 = arith.constant 0 : i32
    return %c0_i32, %c0_i32_0 : i32, i32
  }
  func.func @transform_3(%arg0: i32, %arg1: i32) -> (i32, i32) {
    %c0_i32 = arith.constant 0 : i32
    return %arg0, %arg1 : i32, i32
  }
  func.func @transform_4(%arg0: i32, %arg1: i32) -> (i32, i32) {
    %c0_i32 = arith.constant 0 : i32
    %c0_i32_0 = arith.constant 0 : i32
    return %arg0, %c0_i32 : i32, i32
  }
}

</mosaic_0001>

<llo_original>
// kernel: tpu_custom_call.1
$region0: #{tpu_custom_call.1}
  #allocation0 [shape = 'u32[]', space=smem, size = 0x4, offset = 0x4, fixed_abs, tag = 'smem constant byte address 0x4 - core index']
  #allocation1 [shape = 'u32[144,128]{1,0:T(1,128)}', space=vmem, size = 0x12000, scoped, tag = 'internal scratch']
  #allocation2 [shape = 'f32[128,128]{1,0:T(8,128)}', space=vmem, size = 0x10000, scoped, tag = 'scratch operand']
  %s0 = inlined_call_operand.hbm [shape: f32[128,128], index: 0, kind: input, shape index: {}]
  %s1 = inlined_call_operand.hbm [shape: f32[128,128], index: 1, kind: input, shape index: {}]
  %s2 = inlined_call_operand.vmem [shape: f32[1,128], index: 2, kind: input, shape index: {}]
  %s3 = inlined_call_operand.hbm [shape: f32[128,128], index: 3, kind: input, shape index: {}]
  %s4 = inlined_call_operand.hbm [shape: f32[128,128], index: 4, kind: output, shape index: {}]
  %s5 = sld [smem:[#allocation0]]
  $region46: #{tpu_custom_call.1} parent=0
    _
  %s7 = ssub.s32 1, %s5
  %s8 = scalar_select 0, %s7, %s5
  $region1: #{tpu_custom_call.1} parent=0
    #allocation3 [shape = 'u8[65536]{0}', space=vmem, size = 0x10000, scoped, tag = 'input window, operand 0, single buffered']
    #allocation4 [shape = 's32[1]{0}', space=sflag, size = 0x4, scoped, tag = 'scoped memory for tpu_custom_call.1']
    #allocation5 [shape = 's32[1]{0}', space=sflag, size = 0x4, scoped, tag = 'scoped memory for tpu_custom_call.1']
    #allocation6 [shape = 'u8[65536]{0}', space=vmem, size = 0x10000, scoped, tag = 'input window, operand 1, single buffered']
    #allocation7 [shape = 's32[1]{0}', space=sflag, size = 0x4, scoped, tag = 'scoped memory for tpu_custom_call.1']
    #allocation8 [shape = 'u8[65536]{0}', space=vmem, size = 0x10000, scoped, tag = 'input window, operand 3, single buffered']
    #allocation9 [shape = 'u8[65536]{0}', space=vmem, size = 0x10000, scoped, tag = 'output window, operand 0, single buffered']
    %9 = vsyncpa [#allocation4], 0
    %10 = vsyncpa [#allocation7], 0
    %11 = vsyncpa [#allocation5], 0
    // Predicated region
    $region2: #{tpu_custom_call.1} parent=1 // pred_check
      _
    $region3: #{tpu_custom_call.1} parent=1 // pred_check_branch
      %13 = sbr.rel (0) target = $region5
    $region4: #{tpu_custom_call.1} parent=1 // pred_region
      %p14 = scmp.eq.s32.totalorder 0, 0
      %s15 = scalar_select %p14, 0, 0
      %s16 = smul.u32 16, %s15
      %s18 = ssub.s32 2048, 2048
      %19 = vsyncadd [#allocation4], %s18
      %s20 = smul.addr %s16, 128
      %s21 = scalar_lea.hbm %s0, %s20
      %s22 = sshll.u32 [#allocation3], 4
      %s23 = int_to_ptr.vmem [resolvable:$true] %s22
      %28 = dma.hbm_to_vmem [thread:$0]  %s21, 2048, %s23, [#allocation4], 128, 128, 8
    $region5: #{tpu_custom_call.1} parent=1 // pred_fallthru
      _
    // Predicated region
    $region6: #{tpu_custom_call.1} parent=1 // pred_check
      _
    $region7: #{tpu_custom_call.1} parent=1 // pred_check_branch
      %30 = sbr.rel (0) target = $region9
    $region8: #{tpu_custom_call.1} parent=1 // pred_region
      %s32 = ssub.s32 2048, 2048
      %33 = vsyncadd [#allocation7], %s32
      %s34 = sshll.u32 [#allocation6], 4
      %s35 = int_to_ptr.vmem [resolvable:$true] %s34
      %40 = dma.hbm_to_vmem [thread:$0]  %s1, 2048, %s35, [#allocation7], 128, 128, 8
    $region9: #{tpu_custom_call.1} parent=1 // pred_fallthru
      _
    // Predicated region
    $region10: #{tpu_custom_call.1} parent=1 // pred_check
      _
    $region11: #{tpu_custom_call.1} parent=1 // pred_check_branch
      %42 = sbr.rel (0) target = $region13
    $region12: #{tpu_custom_call.1} parent=1 // pred_region
      _
    $region13: #{tpu_custom_call.1} parent=1 // pred_fallthru
      _
    // Predicated region
    $region14: #{tpu_custom_call.1} parent=1 // pred_check
      _
    $region15: #{tpu_custom_call.1} parent=1 // pred_check_branch
      %44 = sbr.rel (0) target = $region17
    $region16: #{tpu_custom_call.1} parent=1 // pred_region
      %s46 = ssub.s32 2048, 2048
      %47 = vsyncadd [#allocation7], %s46
      %s48 = sshll.u32 [#allocation8], 4
      %s49 = int_to_ptr.vmem [resolvable:$true] %s48
      %54 = dma.hbm_to_vmem [thread:$0]  %s3, 2048, %s49, [#allocation7], 128, 128, 8
    $region17: #{tpu_custom_call.1} parent=1 // pred_fallthru
      _
    // Predicated region
    $region18: #{tpu_custom_call.1} parent=1 // pred_check
      _
    $region19: #{tpu_custom_call.1} parent=1 // pred_check_branch
      %56 = sbr.rel (0) target = $region21
    $region20: #{tpu_custom_call.1} parent=1 // pred_region
      %57 = dma.done [#allocation4], 2048
    $region21: #{tpu_custom_call.1} parent=1 // pred_fallthru
      _
    // Predicated region
    $region22: #{tpu_custom_call.1} parent=1 // pred_check
      _
    $region23: #{tpu_custom_call.1} parent=1 // pred_check_branch
      %59 = sbr.rel (0) target = $region25
    $region24: #{tpu_custom_call.1} parent=1 // pred_region
      %60 = dma.done [#allocation7], 2048
    $region25: #{tpu_custom_call.1} parent=1 // pred_fallthru
      _
    // Predicated region
    $region26: #{tpu_custom_call.1} parent=1 // pred_check
      _
    $region27: #{tpu_custom_call.1} parent=1 // pred_check_branch
      %62 = sbr.rel (0) target = $region29
    $region28: #{tpu_custom_call.1} parent=1 // pred_region
      %63 = dma.done [#allocation7], 2048
    $region29: #{tpu_custom_call.1} parent=1 // pred_fallthru
      _
    %p64 = scmp.eq.s32.totalorder 0, 0
    %s65 = scalar_select %p64, 0, 0
    %s66 = smul.u32 16, %s65
    %s67 = smul.u32 0, 128
    %p68 = scmp.eq.s32.totalorder 0, 0
    // Predicated region
    $region30: #{tpu_custom_call.1} parent=1 // pred_check
      %p69 = pneg %p68
    $region31: #{tpu_custom_call.1} parent=1 // pred_check_branch
      %71 = sbr.rel (%p69) target = $region33
    $region32: #{tpu_custom_call.1} parent=1 // pred_region
      %v72 = vld [vmem:[#allocation3] sm:$0xff]
      %v73 = vld [vmem:[#allocation3 + $0x8] sm:$0xff]
      %v74 = vld [vmem:[#allocation3 + $0x10] sm:$0xff]
      %v75 = vld [vmem:[#allocation3 + $0x18] sm:$0xff]
      %v76 = vld [vmem:[#allocation3 + $0x20] sm:$0xff]
      %v77 = vld [vmem:[#allocation3 + $0x28] sm:$0xff]
      %v78 = vld [vmem:[#allocation3 + $0x30] sm:$0xff]
      %v79 = vld [vmem:[#allocation3 + $0x38] sm:$0xff]
      %v80 = vld [vmem:[#allocation3 + $0x40] sm:$0xff]
      %v81 = vld [vmem:[#allocation3 + $0x48] sm:$0xff]
      %v82 = vld [vmem:[#allocation3 + $0x50] sm:$0xff]
      %v83 = vld [vmem:[#allocation3 + $0x58] sm:$0xff]
      %v84 = vld [vmem:[#allocation3 + $0x60] sm:$0xff]
      %v85 = vld [vmem:[#allocation3 + $0x68] sm:$0xff]
      %v86 = vld [vmem:[#allocation3 + $0x70] sm:$0xff]
      %v87 = vld [vmem:[#allocation3 + $0x78] sm:$0xff]
      %v88 = vld [vmem:[#allocation6] sm:$0xff]
      %v89 = vld [vmem:[#allocation6 + $0x8] sm:$0xff]
      %v90 = vld [vmem:[#allocation6 + $0x10] sm:$0xff]
      %v91 = vld [vmem:[#allocation6 + $0x18] sm:$0xff]
      %v92 = vld [vmem:[#allocation6 + $0x20] sm:$0xff]
      %v93 = vld [vmem:[#allocation6 + $0x28] sm:$0xff]
      %v94 = vld [vmem:[#allocation6 + $0x30] sm:$0xff]
      %v95 = vld [vmem:[#allocation6 + $0x38] sm:$0xff]
      %v96 = vld [vmem:[#allocation6 + $0x40] sm:$0xff]
      %v97 = vld [vmem:[#allocation6 + $0x48] sm:$0xff]
      %v98 = vld [vmem:[#allocation6 + $0x50] sm:$0xff]
      %v99 = vld [vmem:[#allocation6 + $0x58] sm:$0xff]
      %v100 = vld [vmem:[#allocation6 + $0x60] sm:$0xff]
      %v101 = vld [vmem:[#allocation6 + $0x68] sm:$0xff]
      %v102 = vld [vmem:[#allocation6 + $0x70] sm:$0xff]
      %v103 = vld [vmem:[#allocation6 + $0x78] sm:$0xff]
      %104 = vmatprep.subr.mxu0 0.0
      %105 = vmatpush1.msra.mxu0 %v88
      %106 = vmatprep.subr.mxu0 0.0
      %107 = vmatpush1.msra.mxu0 %v89
      %108 = vmatprep.subr.mxu0 0.0
      %109 = vmatpush1.msra.mxu0 %v90
      %110 = vmatprep.subr.mxu0 0.0
      %111 = vmatpush1.msra.mxu0 %v91
      %112 = vmatprep.subr.mxu0 0.0
      %113 = vmatpush1.msra.mxu0 %v92
      %114 = vmatprep.subr.mxu0 0.0
      %115 = vmatpush1.msra.mxu0 %v93
      %116 = vmatprep.subr.mxu0 0.0
      %117 = vmatpush1.msra.mxu0 %v94
      %118 = vmatprep.subr.mxu0 0.0
      %119 = vmatpush1.msra.mxu0 %v95
      %120 = vmatprep.subr.mxu0 0.0
      %121 = vmatpush1.msra.mxu0 %v96
      %122 = vmatprep.subr.mxu0 0.0
      %123 = vmatpush1.msra.mxu0 %v97
      %124 = vmatprep.subr.mxu0 0.0
      %125 = vmatpush1.msra.mxu0 %v98
      %126 = vmatprep.subr.mxu0 0.0
      %127 = vmatpush1.msra.mxu0 %v99
      %128 = vmatprep.subr.mxu0 0.0
      %129 = vmatpush1.msra.mxu0 %v100
      %130 = vmatprep.subr.mxu0 0.0
      %131 = vmatpush1.msra.mxu0 %v101
      %132 = vmatprep.subr.mxu0 0.0
      %133 = vmatpush1.msra.mxu0 %v102
      %134 = vmatprep.subr.mxu0 0.0
      %135 = vmatpush1.msra.mxu0 %v103
      %136 = vmatprep.subr.mxu0 0.0
      %137 = vmatpush1.msra.mxu0 0.0
      %138 = vmatprep.subr.mxu0 0.0
      %139 = vmatpush1.msra.mxu0 0.0
      %140 = vmatprep.subr.mxu0 0.0
      %141 = vmatpush1.msra.mxu0 0.0
      %142 = vmatprep.subr.mxu0 0.0
      %143 = vmatpush1.msra.mxu0 0.0
      %144 = vmatprep.subr.mxu0 0.0
      %145 = vmatpush1.msra.mxu0 0.0
      %146 = vmatprep.subr.mxu0 0.0
      %147 = vmatpush1.msra.mxu0 0.0
      %148 = vmatprep.subr.mxu0 0.0
      %149 = vmatpush1.msra.mxu0 0.0
      %150 = vmatprep.subr.mxu0 0.0
      %151 = vmatpush1.msra.mxu0 0.0
      %152 = vmatprep.subr.mxu0 0.0
      %153 = vmatpush1.msra.mxu0 0.0
      %154 = vmatprep.subr.mxu0 0.0
      %155 = vmatpush1.msra.mxu0 0.0
      %156 = vmatprep.subr.mxu0 0.0
      %157 = vmatpush1.msra.mxu0 0.0
      %158 = vmatprep.subr.mxu0 0.0
      %159 = vmatpush1.msra.mxu0 0.0
      %160 = vmatprep.subr.mxu0 0.0
      %161 = vmatpush1.msra.mxu0 0.0
      %162 = vmatprep.subr.mxu0 0.0
      %163 = vmatpush1.msra.mxu0 0.0
      %164 = vmatprep.subr.mxu0 0.0
      %165 = vmatpush1.msra.mxu0 0.0
      %166 = vmatprep.subr.mxu0 0.0
      %167 = vmatpush1.msra.mxu0 0.0
      %168 = vmatprep.mubr.f32.mxu0 0.0
      %169 = vmatmul.mubr.f32.gmra.mrb[0].mxu0 %v72
      %v170 = vpop.f32.mrb[0].mxu0
      %v171 = vadd.f32 0.0, %v170
      %v172 = vpop.f32.mrb[0].mxu0
      %173 = vmatprep.mubr.f32.mxu0 0.0
      %174 = vmatmul.mubr.f32.gmra.mrb[0].mxu0 %v73
      %v175 = vpop.f32.mrb[0].mxu0
      %v176 = vadd.f32 0.0, %v175
      %v177 = vpop.f32.mrb[0].mxu0
      %178 = vmatprep.mubr.f32.mxu0 0.0
      %179 = vmatmul.mubr.f32.gmra.mrb[0].mxu0 %v74
      %v180 = vpop.f32.mrb[0].mxu0
      %v181 = vadd.f32 0.0, %v180
      %v182 = vpop.f32.mrb[0].mxu0
      %183 = vmatprep.mubr.f32.mxu0 0.0
      %184 = vmatmul.mubr.f32.gmra.mrb[0].mxu0 %v75
      %v185 = vpop.f32.mrb[0].mxu0
      %v186 = vadd.f32 0.0, %v185
      %v187 = vpop.f32.mrb[0].mxu0
      %188 = vmatprep.mubr.f32.mxu0 0.0
      %189 = vmatmul.mubr.f32.gmra.mrb[0].mxu0 %v76
      %v190 = vpop.f32.mrb[0].mxu0
      %v191 = vadd.f32 0.0, %v190
      %v192 = vpop.f32.mrb[0].mxu0
      %193 = vmatprep.mubr.f32.mxu0 0.0
      %194 = vmatmul.mubr.f32.gmra.mrb[0].mxu0 %v77
      %v195 = vpop.f32.mrb[0].mxu0
      %v196 = vadd.f32 0.0, %v195
      %v197 = vpop.f32.mrb[0].mxu0
      %198 = vmatprep.mubr.f32.mxu0 0.0
      %199 = vmatmul.mubr.f32.gmra.mrb[0].mxu0 %v78
      %v200 = vpop.f32.mrb[0].mxu0
      %v201 = vadd.f32 0.0, %v200
      %v202 = vpop.f32.mrb[0].mxu0
      %203 = vmatprep.mubr.f32.mxu0 0.0
      %204 = vmatmul.mubr.f32.gmra.mrb[0].mxu0 %v79
      %v205 = vpop.f32.mrb[0].mxu0
      %v206 = vadd.f32 0.0, %v205
      %v207 = vpop.f32.mrb[0].mxu0
      %208 = vmatprep.mubr.f32.mxu0 0.0
      %209 = vmatmul.mubr.f32.gmra.mrb[0].mxu0 %v80
      %v210 = vpop.f32.mrb[0].mxu0
      %v211 = vadd.f32 0.0, %v210
      %v212 = vpop.f32.mrb[0].mxu0
      %213 = vmatprep.mubr.f32.mxu0 0.0
      %214 = vmatmul.mubr.f32.gmra.mrb[0].mxu0 %v81
      %v215 = vpop.f32.mrb[0].mxu0
      %v216 = vadd.f32 0.0, %v215
      %v217 = vpop.f32.mrb[0].mxu0
      %218 = vmatprep.mubr.f32.mxu0 0.0
      %219 = vmatmul.mubr.f32.gmra.mrb[0].mxu0 %v82
      %v220 = vpop.f32.mrb[0].mxu0
      %v221 = vadd.f32 0.0, %v220
      %v222 = vpop.f32.mrb[0].mxu0
      %223 = vmatprep.mubr.f32.mxu0 0.0
      %224 = vmatmul.mubr.f32.gmra.mrb[0].mxu0 %v83
      %v225 = vpop.f32.mrb[0].mxu0
      %v226 = vadd.f32 0.0, %v225
      %v227 = vpop.f32.mrb[0].mxu0
      %228 = vmatprep.mubr.f32.mxu0 0.0
      %229 = vmatmul.mubr.f32.gmra.mrb[0].mxu0 %v84
      %v230 = vpop.f32.mrb[0].mxu0
      %v231 = vadd.f32 0.0, %v230
      %v232 = vpop.f32.mrb[0].mxu0
      %233 = vmatprep.mubr.f32.mxu0 0.0
      %234 = vmatmul.mubr.f32.gmra.mrb[0].mxu0 %v85
      %v235 = vpop.f32.mrb[0].mxu0
      %v236 = vadd.f32 0.0, %v235
      %v237 = vpop.f32.mrb[0].mxu0
      %238 = vmatprep.mubr.f32.mxu0 0.0
      %239 = vmatmul.mubr.f32.gmra.mrb[0].mxu0 %v86
      %v240 = vpop.f32.mrb[0].mxu0
      %v241 = vadd.f32 0.0, %v240
      %v242 = vpop.f32.mrb[0].mxu0
      %243 = vmatprep.mubr.f32.mxu0 0.0
      %244 = vmatmul.mubr.f32.gmra.mrb[0].mxu0 %v87
      %v245 = vpop.f32.mrb[0].mxu0
      %v246 = vadd.f32 0.0, %v245
      %v247 = vpop.f32.mrb[0].mxu0
      %248 = vdwg.mxu0
      %s249 = scalar_lea.vmem [#allocation2], %s67
      %250 = vst [vmem:[%s249] sm:$0xff] %v171
      %251 = vst [vmem:[%s249 + $0x8] sm:$0xff] %v176
      %252 = vst [vmem:[%s249 + $0x10] sm:$0xff] %v181
      %253 = vst [vmem:[%s249 + $0x18] sm:$0xff] %v186
      %254 = vst [vmem:[%s249 + $0x20] sm:$0xff] %v191
      %255 = vst [vmem:[%s249 + $0x28] sm:$0xff] %v196
      %256 = vst [vmem:[%s249 + $0x30] sm:$0xff] %v201
      %257 = vst [vmem:[%s249 + $0x38] sm:$0xff] %v206
      %258 = vst [vmem:[%s249 + $0x40] sm:$0xff] %v211
      %259 = vst [vmem:[%s249 + $0x48] sm:$0xff] %v216
      %260 = vst [vmem:[%s249 + $0x50] sm:$0xff] %v221
      %261 = vst [vmem:[%s249 + $0x58] sm:$0xff] %v226
      %262 = vst [vmem:[%s249 + $0x60] sm:$0xff] %v231
      %263 = vst [vmem:[%s249 + $0x68] sm:$0xff] %v236
      %264 = vst [vmem:[%s249 + $0x70] sm:$0xff] %v241
      %265 = vst [vmem:[%s249 + $0x78] sm:$0xff] %v246
    $region33: #{tpu_custom_call.1} parent=1 // pred_fallthru
      _
    %p266 = scmp.eq.s32.totalorder 0, 0
    // Predicated region
    $region34: #{tpu_custom_call.1} parent=1 // pred_check
      %p267 = pneg %p266
    $region35: #{tpu_custom_call.1} parent=1 // pred_check_branch
      %269 = sbr.rel (%p267) target = $region37
    $region36: #{tpu_custom_call.1} parent=1 // pred_region
      %v270 = vld [vmem:[%s2] sm:$0x1]
      %v272 = vlaneseq
      %v273 = vshrl.u32 %v272, 7
      %v274 = vsub.s32 0, %v273
      %v275 = vrot.slane %v270, %v274
      %277 = vst [vmem:[#allocation9] sm:$0xff] %v275
      %278 = vst [vmem:[#allocation9 + $0x8] sm:$0xff] %v275
      %279 = vst [vmem:[#allocation9 + $0x10] sm:$0xff] %v275
      %280 = vst [vmem:[#allocation9 + $0x18] sm:$0xff] %v275
      %281 = vst [vmem:[#allocation9 + $0x20] sm:$0xff] %v275
      %282 = vst [vmem:[#allocation9 + $0x28] sm:$0xff] %v275
      %283 = vst [vmem:[#allocation9 + $0x30] sm:$0xff] %v275
      %284 = vst [vmem:[#allocation9 + $0x38] sm:$0xff] %v275
      %285 = vst [vmem:[#allocation9 + $0x40] sm:$0xff] %v275
      %286 = vst [vmem:[#allocation9 + $0x48] sm:$0xff] %v275
      %287 = vst [vmem:[#allocation9 + $0x50] sm:$0xff] %v275
      %288 = vst [vmem:[#allocation9 + $0x58] sm:$0xff] %v275
      %289 = vst [vmem:[#allocation9 + $0x60] sm:$0xff] %v275
      %290 = vst [vmem:[#allocation9 + $0x68] sm:$0xff] %v275
      %291 = vst [vmem:[#allocation9 + $0x70] sm:$0xff] %v275
      %292 = vst [vmem:[#allocation9 + $0x78] sm:$0xff] %v275
    $region37: #{tpu_custom_call.1} parent=1 // pred_fallthru
      _
    %s293 = scalar_lea.vmem [#allocation2], %s67
    %v294 = vld [vmem:[%s293] sm:$0xff]
    %v295 = vld [vmem:[%s293 + $0x8] sm:$0xff]
    %v296 = vld [vmem:[%s293 + $0x10] sm:$0xff]
    %v297 = vld [vmem:[%s293 + $0x18] sm:$0xff]
    %v298 = vld [vmem:[%s293 + $0x20] sm:$0xff]
    %v299 = vld [vmem:[%s293 + $0x28] sm:$0xff]
    %v300 = vld [vmem:[%s293 + $0x30] sm:$0xff]
    %v301 = vld [vmem:[%s293 + $0x38] sm:$0xff]
    %v302 = vld [vmem:[%s293 + $0x40] sm:$0xff]
    %v303 = vld [vmem:[%s293 + $0x48] sm:$0xff]
    %v304 = vld [vmem:[%s293 + $0x50] sm:$0xff]
    %v305 = vld [vmem:[%s293 + $0x58] sm:$0xff]
    %v306 = vld [vmem:[%s293 + $0x60] sm:$0xff]
    %v307 = vld [vmem:[%s293 + $0x68] sm:$0xff]
    %v308 = vld [vmem:[%s293 + $0x70] sm:$0xff]
    %v309 = vld [vmem:[%s293 + $0x78] sm:$0xff]
    %v310 = vld [vmem:[#allocation9] sm:$0xff]
    %v311 = vld [vmem:[#allocation9 + $0x8] sm:$0xff]
    %v312 = vld [vmem:[#allocation9 + $0x10] sm:$0xff]
    %v313 = vld [vmem:[#allocation9 + $0x18] sm:$0xff]
    %v314 = vld [vmem:[#allocation9 + $0x20] sm:$0xff]
    %v315 = vld [vmem:[#allocation9 + $0x28] sm:$0xff]
    %v316 = vld [vmem:[#allocation9 + $0x30] sm:$0xff]
    %v317 = vld [vmem:[#allocation9 + $0x38] sm:$0xff]
    %v318 = vld [vmem:[#allocation9 + $0x40] sm:$0xff]
    %v319 = vld [vmem:[#allocation9 + $0x48] sm:$0xff]
    %v320 = vld [vmem:[#allocation9 + $0x50] sm:$0xff]
    %v321 = vld [vmem:[#allocation9 + $0x58] sm:$0xff]
    %v322 = vld [vmem:[#allocation9 + $0x60] sm:$0xff]
    %v323 = vld [vmem:[#allocation9 + $0x68] sm:$0xff]
    %v324 = vld [vmem:[#allocation9 + $0x70] sm:$0xff]
    %v325 = vld [vmem:[#allocation9 + $0x78] sm:$0xff]
    %v326 = vld [vmem:[#allocation8] sm:$0xff]
    %v327 = vld [vmem:[#allocation8 + $0x8] sm:$0xff]
    %v328 = vld [vmem:[#allocation8 + $0x10] sm:$0xff]
    %v329 = vld [vmem:[#allocation8 + $0x18] sm:$0xff]
    %v330 = vld [vmem:[#allocation8 + $0x20] sm:$0xff]
    %v331 = vld [vmem:[#allocation8 + $0x28] sm:$0xff]
    %v332 = vld [vmem:[#allocation8 + $0x30] sm:$0xff]
    %v333 = vld [vmem:[#allocation8 + $0x38] sm:$0xff]
    %v334 = vld [vmem:[#allocation8 + $0x40] sm:$0xff]
    %v335 = vld [vmem:[#allocation8 + $0x48] sm:$0xff]
    %v336 = vld [vmem:[#allocation8 + $0x50] sm:$0xff]
    %v337 = vld [vmem:[#allocation8 + $0x58] sm:$0xff]
    %v338 = vld [vmem:[#allocation8 + $0x60] sm:$0xff]
    %v339 = vld [vmem:[#allocation8 + $0x68] sm:$0xff]
    %v340 = vld [vmem:[#allocation8 + $0x70] sm:$0xff]
    %v341 = vld [vmem:[#allocation8 + $0x78] sm:$0xff]
    %342 = vmatprep.subr.mxu0 0.0
    %343 = vmatpush1.msra.mxu0 %v294
    %344 = vmatprep.subr.mxu0 0.0
    %345 = vmatpush1.msra.mxu0 %v295
    %346 = vmatprep.subr.mxu0 0.0
    %347 = vmatpush1.msra.mxu0 %v296
    %348 = vmatprep.subr.mxu0 0.0
    %349 = vmatpush1.msra.mxu0 %v297
    %350 = vmatprep.subr.mxu0 0.0
    %351 = vmatpush1.msra.mxu0 %v298
    %352 = vmatprep.subr.mxu0 0.0
    %353 = vmatpush1.msra.mxu0 %v299
    %354 = vmatprep.subr.mxu0 0.0
    %355 = vmatpush1.msra.mxu0 %v300
    %356 = vmatprep.subr.mxu0 0.0
    %357 = vmatpush1.msra.mxu0 %v301
    %358 = vmatprep.subr.mxu0 0.0
    %359 = vmatpush1.msra.mxu0 %v302
    %360 = vmatprep.subr.mxu0 0.0
    %361 = vmatpush1.msra.mxu0 %v303
    %362 = vmatprep.subr.mxu0 0.0
    %363 = vmatpush1.msra.mxu0 %v304
    %364 = vmatprep.subr.mxu0 0.0
    %365 = vmatpush1.msra.mxu0 %v305
    %366 = vmatprep.subr.mxu0 0.0
    %367 = vmatpush1.msra.mxu0 %v306
    %368 = vmatprep.subr.mxu0 0.0
    %369 = vmatpush1.msra.mxu0 %v307
    %370 = vmatprep.subr.mxu0 0.0
    %371 = vmatpush1.msra.mxu0 %v308
    %372 = vmatprep.subr.mxu0 0.0
    %373 = vmatpush1.msra.mxu0 %v309
    %374 = vmatprep.subr.mxu0 0.0
    %375 = vmatpush1.msra.mxu0 0.0
    %376 = vmatprep.subr.mxu0 0.0
    %377 = vmatpush1.msra.mxu0 0.0
    %378 = vmatprep.subr.mxu0 0.0
    %379 = vmatpush1.msra.mxu0 0.0
    %380 = vmatprep.subr.mxu0 0.0
    %381 = vmatpush1.msra.mxu0 0.0
    %382 = vmatprep.subr.mxu0 0.0
    %383 = vmatpush1.msra.mxu0 0.0
    %384 = vmatprep.subr.mxu0 0.0
    %385 = vmatpush1.msra.mxu0 0.0
    %386 = vmatprep.subr.mxu0 0.0
    %387 = vmatpush1.msra.mxu0 0.0
    %388 = vmatprep.subr.mxu0 0.0
    %389 = vmatpush1.msra.mxu0 0.0
    %390 = vmatprep.subr.mxu0 0.0
    %391 = vmatpush1.msra.mxu0 0.0
    %392 = vmatprep.subr.mxu0 0.0
    %393 = vmatpush1.msra.mxu0 0.0
    %394 = vmatprep.subr.mxu0 0.0
    %395 = vmatpush1.msra.mxu0 0.0
    %396 = vmatprep.subr.mxu0 0.0
    %397 = vmatpush1.msra.mxu0 0.0
    %398 = vmatprep.subr.mxu0 0.0
    %399 = vmatpush1.msra.mxu0 0.0
    %400 = vmatprep.subr.mxu0 0.0
    %401 = vmatpush1.msra.mxu0 0.0
    %402 = vmatprep.subr.mxu0 0.0
    %403 = vmatpush1.msra.mxu0 0.0
    %404 = vmatprep.subr.mxu0 0.0
    %405 = vmatpush1.msra.mxu0 0.0
    %406 = vmatprep.mubr.f32.mxu0 0.0
    %407 = vmatmul.mubr.f32.gmra.mrb[0].mxu0 %v326
    %v408 = vpop.f32.mrb[0].mxu0
    %v409 = vadd.f32 0.0, %v408
    %v410 = vpop.f32.mrb[0].mxu0
    %411 = vmatprep.mubr.f32.mxu0 0.0
    %412 = vmatmul.mubr.f32.gmra.mrb[0].mxu0 %v327
    %v413 = vpop.f32.mrb[0].mxu0
    %v414 = vadd.f32 0.0, %v413
    %v415 = vpop.f32.mrb[0].mxu0
    %416 = vmatprep.mubr.f32.mxu0 0.0
    %417 = vmatmul.mubr.f32.gmra.mrb[0].mxu0 %v328
    %v418 = vpop.f32.mrb[0].mxu0
    %v419 = vadd.f32 0.0, %v418
    %v420 = vpop.f32.mrb[0].mxu0
    %421 = vmatprep.mubr.f32.mxu0 0.0
    %422 = vmatmul.mubr.f32.gmra.mrb[0].mxu0 %v329
    %v423 = vpop.f32.mrb[0].mxu0
    %v424 = vadd.f32 0.0, %v423
    %v425 = vpop.f32.mrb[0].mxu0
    %426 = vmatprep.mubr.f32.mxu0 0.0
    %427 = vmatmul.mubr.f32.gmra.mrb[0].mxu0 %v330
    %v428 = vpop.f32.mrb[0].mxu0
    %v429 = vadd.f32 0.0, %v428
    %v430 = vpop.f32.mrb[0].mxu0
    %431 = vmatprep.mubr.f32.mxu0 0.0
    %432 = vmatmul.mubr.f32.gmra.mrb[0].mxu0 %v331
    %v433 = vpop.f32.mrb[0].mxu0
    %v434 = vadd.f32 0.0, %v433
    %v435 = vpop.f32.mrb[0].mxu0
    %436 = vmatprep.mubr.f32.mxu0 0.0
    %437 = vmatmul.mubr.f32.gmra.mrb[0].mxu0 %v332
    %v438 = vpop.f32.mrb[0].mxu0
    %v439 = vadd.f32 0.0, %v438
    %v440 = vpop.f32.mrb[0].mxu0
    %441 = vmatprep.mubr.f32.mxu0 0.0
    %442 = vmatmul.mubr.f32.gmra.mrb[0].mxu0 %v333
    %v443 = vpop.f32.mrb[0].mxu0
    %v444 = vadd.f32 0.0, %v443
    %v445 = vpop.f32.mrb[0].mxu0
    %446 = vmatprep.mubr.f32.mxu0 0.0
    %447 = vmatmul.mubr.f32.gmra.mrb[0].mxu0 %v334
    %v448 = vpop.f32.mrb[0].mxu0
    %v449 = vadd.f32 0.0, %v448
    %v450 = vpop.f32.mrb[0].mxu0
    %451 = vmatprep.mubr.f32.mxu0 0.0
    %452 = vmatmul.mubr.f32.gmra.mrb[0].mxu0 %v335
    %v453 = vpop.f32.mrb[0].mxu0
    %v454 = vadd.f32 0.0, %v453
    %v455 = vpop.f32.mrb[0].mxu0
    %456 = vmatprep.mubr.f32.mxu0 0.0
    %457 = vmatmul.mubr.f32.gmra.mrb[0].mxu0 %v336
    %v458 = vpop.f32.mrb[0].mxu0
    %v459 = vadd.f32 0.0, %v458
    %v460 = vpop.f32.mrb[0].mxu0
    %461 = vmatprep.mubr.f32.mxu0 0.0
    %462 = vmatmul.mubr.f32.gmra.mrb[0].mxu0 %v337
    %v463 = vpop.f32.mrb[0].mxu0
    %v464 = vadd.f32 0.0, %v463
    %v465 = vpop.f32.mrb[0].mxu0
    %466 = vmatprep.mubr.f32.mxu0 0.0
    %467 = vmatmul.mubr.f32.gmra.mrb[0].mxu0 %v338
    %v468 = vpop.f32.mrb[0].mxu0
    %v469 = vadd.f32 0.0, %v468
    %v470 = vpop.f32.mrb[0].mxu0
    %471 = vmatprep.mubr.f32.mxu0 0.0
    %472 = vmatmul.mubr.f32.gmra.mrb[0].mxu0 %v339
    %v473 = vpop.f32.mrb[0].mxu0
    %v474 = vadd.f32 0.0, %v473
    %v475 = vpop.f32.mrb[0].mxu0
    %476 = vmatprep.mubr.f32.mxu0 0.0
    %477 = vmatmul.mubr.f32.gmra.mrb[0].mxu0 %v340
    %v478 = vpop.f32.mrb[0].mxu0
    %v479 = vadd.f32 0.0, %v478
    %v480 = vpop.f32.mrb[0].mxu0
    %481 = vmatprep.mubr.f32.mxu0 0.0
    %482 = vmatmul.mubr.f32.gmra.mrb[0].mxu0 %v341
    %v483 = vpop.f32.mrb[0].mxu0
    %v484 = vadd.f32 0.0, %v483
    %v485 = vpop.f32.mrb[0].mxu0
    %486 = vdwg.mxu0
    %v487 = vadd.f32 %v310, %v409
    %v488 = vadd.f32 %v311, %v414
    %v489 = vadd.f32 %v312, %v419
    %v490 = vadd.f32 %v313, %v424
    %v491 = vadd.f32 %v314, %v429
    %v492 = vadd.f32 %v315, %v434
    %v493 = vadd.f32 %v316, %v439
    %v494 = vadd.f32 %v317, %v444
    %v495 = vadd.f32 %v318, %v449
    %v496 = vadd.f32 %v319, %v454
    %v497 = vadd.f32 %v320, %v459
    %v498 = vadd.f32 %v321, %v464
    %v499 = vadd.f32 %v322, %v469
    %v500 = vadd.f32 %v323, %v474
    %v501 = vadd.f32 %v324, %v479
    %v502 = vadd.f32 %v325, %v484
    %503 = vst [vmem:[#allocation9] sm:$0xff] %v487
    %504 = vst [vmem:[#allocation9 + $0x8] sm:$0xff] %v488
    %505 = vst [vmem:[#allocation9 + $0x10] sm:$0xff] %v489
    %506 = vst [vmem:[#allocation9 + $0x18] sm:$0xff] %v490
    %507 = vst [vmem:[#allocation9 + $0x20] sm:$0xff] %v491
    %508 = vst [vmem:[#allocation9 + $0x28] sm:$0xff] %v492
    %509 = vst [vmem:[#allocation9 + $0x30] sm:$0xff] %v493
    %510 = vst [vmem:[#allocation9 + $0x38] sm:$0xff] %v494
    %511 = vst [vmem:[#allocation9 + $0x40] sm:$0xff] %v495
    %512 = vst [vmem:[#allocation9 + $0x48] sm:$0xff] %v496
    %513 = vst [vmem:[#allocation9 + $0x50] sm:$0xff] %v497
    %514 = vst [vmem:[#allocation9 + $0x58] sm:$0xff] %v498
    %515 = vst [vmem:[#allocation9 + $0x60] sm:$0xff] %v499
    %516 = vst [vmem:[#allocation9 + $0x68] sm:$0xff] %v500
    %517 = vst [vmem:[#allocation9 + $0x70] sm:$0xff] %v501
    %518 = vst [vmem:[#allocation9 + $0x78] sm:$0xff] %v502
    // Predicated region
    $region38: #{tpu_custom_call.1} parent=1 // pred_check
      _
    $region39: #{tpu_custom_call.1} parent=1 // pred_check_branch
      %520 = sbr.rel (0) target = $region41
    $region40: #{tpu_custom_call.1} parent=1 // pred_region
      %s522 = ssub.s32 2048, 2048
      %523 = vsyncadd [#allocation5], %s522
      %s524 = sshll.u32 [#allocation9], 4
      %s525 = int_to_ptr.vmem [resolvable:$true] %s524
      %530 = dma.vmem_to_hbm [thread:$0]  %s525, 2048, %s4, [#allocation5], 128, 128, 8
    $region41: #{tpu_custom_call.1} parent=1 // pred_fallthru
      _
    // Predicated region
    $region42: #{tpu_custom_call.1} parent=1 // pred_check
      _
    $region43: #{tpu_custom_call.1} parent=1 // pred_check_branch
      %532 = sbr.rel (0) target = $region45
    $region44: #{tpu_custom_call.1} parent=1 // pred_region
      %533 = dma.done [#allocation5], 2048
    $region45: #{tpu_custom_call.1} parent=1 // pred_fallthru
      _
    %534 = vsyncpa [#allocation4], 1
    %535 = vsyncpa [#allocation7], 1
    %536 = vsyncpa [#allocation5], 1

</llo_original>
